<compile_context>
chip_gen: v5e
topology: v5e:2x2
jax: 0.10.0
libtpu: 0.0.40
codegen_flags: <defaults>
</compile_context>

<pallas_src>
import functools

import jax
import jax.numpy as jnp
from jax.experimental import pallas as pl
from jax.experimental.pallas import tpu as pltpu

_LANE = 128
_SUBLANE = 8


# ---------------------------------------------------------------------------
# Activations (torch.nn.Tanh / torch.nn.GELU default == exact erf GELU).
# ---------------------------------------------------------------------------
def _apply_activation(out, pool_activation):
    if pool_activation == "tanh":
        return jnp.tanh(out)
    if pool_activation == "gelu":
        return jax.nn.gelu(out, approximate=False)
    return out  # identity (matches the torch module for any other value)


# ---------------------------------------------------------------------------
# Kernels
# ---------------------------------------------------------------------------
def _cls_kernel(x_ref, w_ref, b_ref, o_ref, *, pool_activation):
    # x_ref: (tB, H) CLS rows (sliced in the wrapper -> 1/S of the hidden-state
    # bytes, no in-kernel sublane gather).
    x = x_ref[...].astype(w_ref.dtype)                       # native MXU feed
    out = jnp.dot(x, w_ref[...], preferred_element_type=jnp.float32)
    out = out + b_ref[...].astype(jnp.float32)               # (tB, Fp) + (1, Fp)
    out = _apply_activation(out, pool_activation)
    o_ref[...] = out.astype(o_ref.dtype)


def _mean_kernel(hs_ref, w_ref, b_ref, o_ref, acc_ref, *,
                 seq_len, seq_tile, inv_s, needs_mask, pool_activation):
    k = pl.program_id(1)

    @pl.when(k == 0)
    def _():
        acc_ref[...] = jnp.zeros_like(acc_ref)

    block = hs_ref[...]
    if needs_mask:
        # Ragged last sequence block: zero out rows past the true seq length.
        row = jax.lax.broadcasted_iota(jnp.int32, block.shape, 1) + k * seq_tile
        block = jnp.where(row < seq_len, block, jnp.zeros_like(block))
    # Cast fused into the reduction: no full f32 temp of the (tB, tS, H) block.
    acc_ref[...] += jnp.sum(block, axis=1, dtype=jnp.float32)

    @pl.when(k == pl.num_programs(1) - 1)
    def _():
        pooled = (acc_ref[...] * inv_s).astype(w_ref.dtype)   # f32 mean -> MXU dtype
        out = jnp.dot(pooled, w_ref[...], preferred_element_type=jnp.float32)
        out = out + b_ref[...].astype(jnp.float32)
        out = _apply_activation(out, pool_activation)
        o_ref[...] = out.astype(o_ref.dtype)


# ---------------------------------------------------------------------------
# Tiling helpers
# ---------------------------------------------------------------------------
def _pick_batch_tile(B, cap):
    """Exact-divisor batch tile (batch blocks are never masked)."""
    if B <= cap:
        tb = B
    else:
        tb = None
        t = (cap // _SUBLANE) * _SUBLANE
        while t >= _SUBLANE:
            if B % t == 0:
                tb = t
                break
            t -= _SUBLANE
        if tb is None:
            tb = B  # awkward B: single batch block (still correct)
    # Prefer >= 2 parallel blocks (v7x has two TensorCores) as long as each
    # block still fills the MXU M dimension (>= 128 rows).
    if B // tb < 2 and B >= 256:
        t = (min(cap, B // 2) // _SUBLANE) * _SUBLANE
        while t >= 128:
            if B % t == 0:
                return t
            t -= _SUBLANE
    return tb


def _pick_seq_tile(S, cap_rows):
    """Seq tile <= cap_rows; ragged tail (if any) is masked in-kernel."""
    cap_rows = max(_SUBLANE, (cap_rows // _SUBLANE) * _SUBLANE)
    if S <= cap_rows:
        return S
    t = cap_rows
    while t >= _SUBLANE:
        if S % t == 0:
            return t
        t -= _SUBLANE
    return cap_rows  # no exact divisor: ragged last block, masked in-kernel


def _vmem_limit(block_bytes):
    # Explicit scoped-VMEM budget: assume double buffering (already folded in
    # by the caller), add margin, stay >= the 32 MiB default and <= 56 MiB
    # (safe under v7x's 64 MiB physical VMEM; v5e/v6e have 128 MiB).
    est = int(block_bytes * 1.3) + (2 << 20)
    return max(32 << 20, min(56 << 20, est))


# ---------------------------------------------------------------------------
# Wrapper
# ---------------------------------------------------------------------------
def bert_pooler(hidden_states, weight, bias, *, pooling="CLS",
                pool_activation="tanh", batch_tile=256,
                seq_tile_bytes=8 << 20, use_bf16_mxu=True):
    """hidden_states: [B, S, H], weight: [H, F], bias: [F] -> [B, F]."""
    B, S, H = hidden_states.shape
    F = weight.shape[1]
    out_dtype = hidden_states.dtype

    # --- parameter prep (layout plumbing, not compute hoisting) -------------
    # bf16 MXU feed: f32xf32 matmul costs ~3x MXU passes (and the v7x MXU has
    # no f32 path); bf16 weights also halve the resident weight buffer so the
    # kernel fits v5e's 16 MiB scoped VMEM default.
    if use_bf16_mxu and weight.dtype == jnp.float32:
        weight = weight.astype(jnp.bfloat16)
    # Lane-dense output guard: F not a multiple of 128 lowers output stores to
    # masked vst.msk (~4.5x store overhead). Real BERT (F=768/1024) skips this.
    Fp = ((F + _LANE - 1) // _LANE) * _LANE
    if Fp != F:
        weight = jnp.pad(weight, ((0, 0), (0, Fp - F)))
        bias = jnp.pad(bias, (0, Fp - F))
    bias2d = bias.reshape(1, Fp)

    tB = _pick_batch_tile(B, batch_tile)
    nb = pl.cdiv(B, tB)  # tB divides B by construction
    out_shape = jax.ShapeDtypeStruct((B, Fp), out_dtype)

    w_bytes = 2 * H * Fp * jnp.dtype(weight.dtype).itemsize
    b_bytes = 2 * _SUBLANE * Fp * jnp.dtype(bias2d.dtype).itemsize
    o_bytes = 2 * tB * Fp * jnp.dtype(out_dtype).itemsize

    if pooling == "CLS":
        # Only the CLS row is needed: slice to [B, H] in the wrapper so the
        # kernel DMAs 1/S of the hidden-state bytes (CLS is HBM-bound).
        cls = hidden_states[:, 0, :]
        x_bytes = 2 * tB * H * jnp.dtype(cls.dtype).itemsize
        kernel = functools.partial(_cls_kernel, pool_activation=pool_activation)
        out = pl.pallas_call(
            kernel,
            out_shape=out_shape,
            grid=(nb,),
            in_specs=[
                pl.BlockSpec((tB, H), lambda b: (b, 0)),
                pl.BlockSpec((H, Fp), lambda b: (0, 0)),     # VMEM-resident
                pl.BlockSpec((1, Fp), lambda b: (0, 0)),     # VMEM-resident
            ],
            out_specs=pl.BlockSpec((tB, Fp), lambda b: (b, 0)),
            compiler_params=pltpu.CompilerParams(
                dimension_semantics=("parallel",),
                vmem_limit_bytes=_vmem_limit(
                    x_bytes + w_bytes + b_bytes + o_bytes)),
        )(cls, weight, bias2d)

    elif pooling == "MEAN":
        itemsize = jnp.dtype(hidden_states.dtype).itemsize
        cap_rows = max(_SUBLANE, seq_tile_bytes // max(1, tB * H * itemsize))
        tS = _pick_seq_tile(S, cap_rows)
        ns = pl.cdiv(S, tS)
        needs_mask = (S % tS) != 0
        hs_bytes = 2 * tB * tS * H * itemsize
        acc_bytes = tB * H * 4
        kernel = functools.partial(
            _mean_kernel, seq_len=S, seq_tile=tS, inv_s=1.0 / S,
            needs_mask=needs_mask, pool_activation=pool_activation)
        out = pl.pallas_call(
            kernel,
            out_shape=out_shape,
            grid=(nb, ns),  # reduction (seq) axis last, marked 'arbitrary'
            in_specs=[
                pl.BlockSpec((tB, tS, H), lambda b, k: (b, k, 0)),
                pl.BlockSpec((H, Fp), lambda b, k: (0, 0)),  # VMEM-resident
                pl.BlockSpec((1, Fp), lambda b, k: (0, 0)),  # VMEM-resident
            ],
            out_specs=pl.BlockSpec((tB, Fp), lambda b, k: (b, 0)),
            scratch_shapes=[pltpu.VMEM((tB, H), jnp.float32)],
            compiler_params=pltpu.CompilerParams(
                dimension_semantics=("parallel", "arbitrary"),
                vmem_limit_bytes=_vmem_limit(
                    hs_bytes + w_bytes + b_bytes + o_bytes + acc_bytes)),
        )(hidden_states, weight, bias2d)
    else:
        raise ValueError(f"unknown pooling {pooling!r}")

    return out[:, :F] if Fp != F else out


# ---------------------------------------------------------------------------
# Pure-JAX reference
# ---------------------------------------------------------------------------
def _reference(hidden_states, weight, bias, pooling, pool_activation):
    if pooling == "CLS":
        pooled = hidden_states[:, 0, :]
    else:
        pooled = hidden_states.mean(axis=1)
    out = pooled @ weight + bias
    if pool_activation == "tanh":
        out = jnp.tanh(out)
    elif pool_activation == "gelu":
        out = jax.nn.gelu(out, approximate=False)
    return out


if __name__ == "__main__":
    # config.hidden_size = 32, final_size = 16, batch = 2, seq = 8
    B, S, H, F = 2, 8, 32, 16

    key = jax.random.PRNGKey(0)
    k_hs, k_w, k_b, k_hs2 = jax.random.split(key, 4)
    hidden_states = jax.random.normal(k_hs, (B, S, H), dtype=jnp.float32)
    # Deterministic synthetic parameters (nn.Linear(hidden_size, final_size)).
    weight = jax.random.normal(k_w, (H, F), dtype=jnp.float32) * 0.02
    bias = jax.random.normal(k_b, (F,), dtype=jnp.float32) * 0.02

    ref_cls = _reference(hidden_states, weight, bias, "CLS", "tanh")
    ref_mean = _reference(hidden_states, weight, bias, "MEAN", "tanh")

    # Exact path (f32 MXU feed): tight tolerance.
    out_cls_f32 = bert_pooler(hidden_states, weight, bias, pooling="CLS",
                              pool_activation="tanh", use_bf16_mxu=False)
    out_mean_f32 = bert_pooler(hidden_states, weight, bias, pooling="MEAN",
                               pool_activation="tanh", use_bf16_mxu=False)
    # Default fast path (bf16 MXU feed, f32 accumulation): loose tolerance.
    out_cls_bf16 = bert_pooler(hidden_states, weight, bias, pooling="CLS",
                               pool_activation="tanh")
    out_mean_bf16 = bert_pooler(hidden_states, weight, bias, pooling="MEAN",
                                pool_activation="tanh")
    # Ragged sequence tiling (S not a multiple of the seq tile) exercises the
    # in-kernel masking of the last sequence block.
    S2 = 20
    hs2 = jax.random.normal(k_hs2, (B, S2, H), dtype=jnp.float32)
    ref_mean2 = _reference(hs2, weight, bias, "MEAN", "tanh")
    out_mean2 = bert_pooler(hs2, weight, bias, pooling="MEAN",
                            pool_activation="tanh", use_bf16_mxu=False,
                            seq_tile_bytes=2048)  # forces tS=8 -> 3 seq blocks

    jax.block_until_ready((out_cls_f32, out_mean_f32, out_cls_bf16,
                           out_mean_bf16, out_mean2))

    assert out_cls_f32.shape == (B, F) and out_mean_f32.shape == (B, F)
    assert jnp.allclose(out_cls_f32, ref_cls, atol=1e-5, rtol=1e-5)
    assert jnp.allclose(out_mean_f32, ref_mean, atol=1e-5, rtol=1e-5)
    assert jnp.allclose(out_cls_bf16, ref_cls, atol=2e-2, rtol=2e-2)
    assert jnp.allclose(out_mean_bf16, ref_mean, atol=2e-2, rtol=2e-2)
    assert jnp.allclose(out_mean2, ref_mean2, atol=1e-5, rtol=1e-5)

    # NOTE: the 'gelu' pool_activation branch is implemented in-kernel with the
    # exact (erf) GELU matching torch.nn.GELU(); the torch-default tanh path is
    # what is exercised here.
    print("KERNEL_OK")
</pallas_src>

<mosaic_0001>
module attributes {stable_mosaic.version = 11 : i64} {
  func.func @_cls_kernel(%arg0: i32, %arg1: memref<2x32xf32, #tpu.memory_space<vmem>>, %arg2: memref<32x128xf32, #tpu.memory_space<vmem>>, %arg3: memref<1x128xf32, #tpu.memory_space<vmem>>, %arg4: memref<2x128xf32, #tpu.memory_space<vmem>>) attributes {dimension_semantics = [#tpu.dimension_semantics<parallel>], iteration_bounds = array<i64: 1>, scalar_prefetch = 0 : i64, scratch_operands = 0 : i64, tpu.core_type = #tpu.core_type<tc>, window_params = [{transform_indices = @transform_0, window_bounds = array<i64: 2, 32>}, {pipeline_mode = #tpu.pipeline_mode<synchronous>, transform_indices = @transform_1, window_bounds = array<i64: 32, 128>}, {pipeline_mode = #tpu.pipeline_mode<synchronous>, transform_indices = @transform_2, window_bounds = array<i64: 1, 128>}, {transform_indices = @transform_3, window_bounds = array<i64: 2, 128>}]} {
    %c0 = arith.constant 0 : index
    %c0_0 = arith.constant 0 : index
    %0 = vector.load %arg1[%c0, %c0_0] : memref<2x32xf32, #tpu.memory_space<vmem>>, vector<2x32xf32>
    %c0_1 = arith.constant 0 : index
    %c0_2 = arith.constant 0 : index
    %1 = vector.load %arg2[%c0_1, %c0_2] : memref<32x128xf32, #tpu.memory_space<vmem>>, vector<32x128xf32>
    %cst = arith.constant dense<0.000000e+00> : vector<2x128xf32>
    %2 = tpu.matmul %0, %1, %cst {dimension_numbers = #tpu.dot_dimension_numbers<[1], [0], [0], [1], [0, 0, 1, 1], [], []>} : vector<2x32xf32>, vector<32x128xf32>, vector<2x128xf32> -> vector<2x128xf32>
    %c0_3 = arith.constant 0 : index
    %c0_4 = arith.constant 0 : index
    %3 = vector.load %arg3[%c0_3, %c0_4] : memref<1x128xf32, #tpu.memory_space<vmem>>, vector<1x128xf32>
    %4 = vector.broadcast %3 : vector<1x128xf32> to vector<2x128xf32>
    %5 = arith.addf %2, %4 : vector<2x128xf32>
    %6 = math.tanh %5 : vector<2x128xf32>
    %c0_5 = arith.constant 0 : index
    %c0_6 = arith.constant 0 : index
    %7 = vector.load %arg4[%c0_5, %c0_6] : memref<2x128xf32, #tpu.memory_space<vmem>>, vector<2x128xf32>
    tpu.vector_store %arg4[%c0_5, %c0_6], %6 {strides = array<i32>} : memref<2x128xf32, #tpu.memory_space<vmem>>, vector<2x128xf32>,
    return
  }
  func.func @transform_0(%arg0: i32) -> (i32, i32) {
    %c0_i32 = arith.constant 0 : i32
    %c0_i32_0 = arith.constant 0 : i32
    return %arg0, %c0_i32 : i32, i32
  }
  func.func @transform_1(%arg0: i32) -> (i32, i32) {
    %c0_i32 = arith.constant 0 : i32
    %c0_i32_0 = arith.constant 0 : i32
    %c0_i32_1 = arith.constant 0 : i32
    return %c0_i32, %c0_i32_0 : i32, i32
  }
  func.func @transform_2(%arg0: i32) -> (i32, i32) {
    %c0_i32 = arith.constant 0 : i32
    %c0_i32_0 = arith.constant 0 : i32
    %c0_i32_1 = arith.constant 0 : i32
    return %c0_i32, %c0_i32_0 : i32, i32
  }
  func.func @transform_3(%arg0: i32) -> (i32, i32) {
    %c0_i32 = arith.constant 0 : i32
    %c0_i32_0 = arith.constant 0 : i32
    return %arg0, %c0_i32 : i32, i32
  }
}

</mosaic_0001>

<llo_original>
// kernel: tpu_custom_call.1
$region0: #{tpu_custom_call.1}
  #allocation0 [shape = 'u32[]', space=smem, size = 0x4, offset = 0x4, fixed_abs, tag = 'smem constant byte address 0x4 - core index']
  #allocation1 [shape = 'u32[72,128]{1,0:T(1,128)}', space=vmem, size = 0x9000, scoped, tag = 'internal scratch']
  %s0 = inlined_call_operand.hbm [shape: f32[2,32], index: 0, kind: input, shape index: {}]
  %s1 = inlined_call_operand.hbm [shape: f32[32,128], index: 1, kind: input, shape index: {}]
  %s2 = inlined_call_operand.vmem [shape: f32[1,128], index: 2, kind: input, shape index: {}]
  %s3 = inlined_call_operand.hbm [shape: f32[2,128], index: 3, kind: output, shape index: {}]
  %s4 = sld [smem:[#allocation0]]
  $region30: #{tpu_custom_call.1} parent=0
    _
  %s6 = ssub.s32 1, %s4
  %s7 = scalar_select 0, %s6, %s4
  $region1: #{tpu_custom_call.1} parent=0
    #allocation2 [shape = 'u8[1024]{0}', space=vmem, size = 0x400, scoped, tag = 'input window, operand 0, single buffered']
    #allocation3 [shape = 's32[1]{0}', space=sflag, size = 0x4, scoped, tag = 'scoped memory for tpu_custom_call.1']
    #allocation4 [shape = 's32[1]{0}', space=sflag, size = 0x4, scoped, tag = 'scoped memory for tpu_custom_call.1']
    #allocation5 [shape = 'u8[16384]{0}', space=vmem, size = 0x4000, scoped, tag = 'input window, operand 1, single buffered']
    #allocation6 [shape = 's32[1]{0}', space=sflag, size = 0x4, scoped, tag = 'scoped memory for tpu_custom_call.1']
    #allocation7 [shape = 'u8[1024]{0}', space=vmem, size = 0x400, scoped, tag = 'output window, operand 0, single buffered']
    %8 = vsyncpa [#allocation3], 0
    %9 = vsyncpa [#allocation6], 0
    %10 = vsyncpa [#allocation4], 0
    // Predicated region
    $region2: #{tpu_custom_call.1} parent=1 // pred_check
      _
    $region3: #{tpu_custom_call.1} parent=1 // pred_check_branch
      %12 = sbr.rel (0) target = $region5
    $region4: #{tpu_custom_call.1} parent=1 // pred_region
      %14 = vsyncadd [#allocation3], 0
      %s16 = sshll.u32 %s0, 4
      %s17 = int_to_ptr.hbm [resolvable:$true] %s16
      %s18 = sshll.u32 [#allocation2], 4
      %s19 = int_to_ptr.vmem [resolvable:$true] %s18
      %21 = dma.hbm_to_vmem [thread:$0]  %s17, 32, %s19, [#allocation3]
    $region5: #{tpu_custom_call.1} parent=1 // pred_fallthru
      _
    // Predicated region
    $region6: #{tpu_custom_call.1} parent=1 // pred_check
      _
    $region7: #{tpu_custom_call.1} parent=1 // pred_check_branch
      %23 = sbr.rel (0) target = $region9
    $region8: #{tpu_custom_call.1} parent=1 // pred_region
      %25 = vsyncadd [#allocation6], 0
      %s26 = sshll.u32 %s1, 4
      %s27 = int_to_ptr.hbm [resolvable:$true] %s26
      %s28 = sshll.u32 [#allocation5], 4
      %s29 = int_to_ptr.vmem [resolvable:$true] %s28
      %34 = dma.hbm_to_vmem [thread:$0]  %s27, 512, %s29, [#allocation6], 128, 128, 8
    $region9: #{tpu_custom_call.1} parent=1 // pred_fallthru
      _
    // Predicated region
    $region10: #{tpu_custom_call.1} parent=1 // pred_check
      _
    $region11: #{tpu_custom_call.1} parent=1 // pred_check_branch
      %36 = sbr.rel (0) target = $region13
    $region12: #{tpu_custom_call.1} parent=1 // pred_region
      _
    $region13: #{tpu_custom_call.1} parent=1 // pred_fallthru
      _
    // Predicated region
    $region14: #{tpu_custom_call.1} parent=1 // pred_check
      _
    $region15: #{tpu_custom_call.1} parent=1 // pred_check_branch
      %38 = sbr.rel (0) target = $region17
    $region16: #{tpu_custom_call.1} parent=1 // pred_region
      %40 = dma.done [#allocation3], 32
    $region17: #{tpu_custom_call.1} parent=1 // pred_fallthru
      _
    // Predicated region
    $region18: #{tpu_custom_call.1} parent=1 // pred_check
      _
    $region19: #{tpu_custom_call.1} parent=1 // pred_check_branch
      %42 = sbr.rel (0) target = $region21
    $region20: #{tpu_custom_call.1} parent=1 // pred_region
      %44 = dma.done [#allocation6], 512
    $region21: #{tpu_custom_call.1} parent=1 // pred_fallthru
      _
    %v45 = vld [vmem:[#allocation2] sm:$0x3]
    %v46 = vld [vmem:[#allocation5] sm:$0xff]
    %v47 = vld [vmem:[#allocation5 + $0x8] sm:$0xff]
    %v48 = vld [vmem:[#allocation5 + $0x10] sm:$0xff]
    %v49 = vld [vmem:[#allocation5 + $0x18] sm:$0xff]
    %v50 = vld [vmem:[%s2] sm:$0x1]
    %v52 = vperm.slane %v50, 0
    %vm54 = vcmask 261120
    %v56 = vsel %vm54, %v45, 0
    %58 = vmatpush.msra.mxu0 0.0
    %59 = vmatpush.msra.mxu0 0.0
    %60 = vmatpush.msra.mxu0 0.0
    %61 = vmatpush.msra.mxu0 0.0
    %62 = vmatpush.msra.mxu0 0.0
    %63 = vmatpush.msra.mxu0 0.0
    %64 = vmatpush.msra.mxu0 0.0
    %65 = vmatpush.msra.mxu0 0.0
    %66 = vmatpush.msra.mxu0 0.0
    %67 = vmatpush.msra.mxu0 0.0
    %68 = vmatpush.msra.mxu0 0.0
    %69 = vmatpush.msra.mxu0 0.0
    %70 = vmatpush.msra.mxu0 %v49
    %71 = vmatpush.msra.mxu0 %v48
    %72 = vmatpush.msra.mxu0 %v47
    %73 = vmatpush.msra.mxu0 %v46
    %74 = vmatmul.f32.gmra.mxu0 %v56
    %v75 = vpop.f32.mrf.mxu0
    %v76 = vadd.f32 %v52, %v75
    %77 = vdwg.mxu0
    %v78 = vtanh.pop %v76
    %79 = vst [vmem:[#allocation7] sm:$0x3] %v78
    // Predicated region
    $region22: #{tpu_custom_call.1} parent=1 // pred_check
      _
    $region23: #{tpu_custom_call.1} parent=1 // pred_check_branch
      %81 = sbr.rel (0) target = $region25
    $region24: #{tpu_custom_call.1} parent=1 // pred_region
      %83 = vsyncadd [#allocation4], 0
      %s85 = sshll.u32 [#allocation7], 4
      %s86 = int_to_ptr.vmem [resolvable:$true] %s85
      %s87 = sshll.u32 %s3, 4
      %s88 = int_to_ptr.hbm [resolvable:$true] %s87
      %90 = dma.vmem_to_hbm [thread:$0]  %s86, 32, %s88, [#allocation4]
    $region25: #{tpu_custom_call.1} parent=1 // pred_fallthru
      _
    // Predicated region
    $region26: #{tpu_custom_call.1} parent=1 // pred_check
      _
    $region27: #{tpu_custom_call.1} parent=1 // pred_check_branch
      %92 = sbr.rel (0) target = $region29
    $region28: #{tpu_custom_call.1} parent=1 // pred_region
      %94 = dma.done [#allocation4], 32
    $region29: #{tpu_custom_call.1} parent=1 // pred_fallthru
      _
    %95 = vsyncpa [#allocation3], 1
    %96 = vsyncpa [#allocation6], 1
    %97 = vsyncpa [#allocation4], 1

</llo_original>
